<compile_context>
chip_gen: v6e
topology: v6e:2x2x1
jax: 0.10.0
libtpu: 0.0.40
codegen_flags: <defaults>
</compile_context>

<pallas_src>
import jax
import jax.numpy as jnp
from jax.experimental import pallas as pl
from jax.experimental.pallas import tpu as pltpu


def _round_up(n, m):
    return ((n + m - 1) // m) * m


def _pick_tm(batch, *, single_tile_max=512, cap=512):
    """Batch-tile rows: single tile for small B; otherwise an even number of
    grid steps (>=2) with tiles <= cap rows (multiple of 8) so both v7x
    TensorCores get work and the MXU sees tall operands."""
    if batch <= single_tile_max:
        return batch
    steps = 2 * pl.cdiv(batch, 2 * cap)          # even step count
    return _round_up(pl.cdiv(batch, steps), 8)


def _vae_kernel(x_ref, eps_ref, sel_ref,
                enc_w, enc_b, ml_w, ml_b,
                d1_w, d1_b, d2_w, d2_b,
                pc_w, pc_b,
                recon_ref, aux_ref):
    """One batch tile [TM, ...] of the fused VAE forward."""
    f32 = jnp.float32
    cdt = enc_w.dtype            # MXU operand dtype (f32 default, bf16 flagged)

    x = x_ref[...].astype(cdt)

    # Encoder: h1 = relu(x @ We + be)
    h1 = jnp.maximum(
        jnp.dot(x, enc_w[...], preferred_element_type=f32) + enc_b[...], 0.0)

    # Fused mu|logvar heads: a single N = 2*LP matmul, split at a 128-lane
    # boundary (pad cols / bias are zero, so pad lanes stay exactly zero).
    ml = jnp.dot(h1.astype(cdt), ml_w[...],
                 preferred_element_type=f32) + ml_b[...]
    LP = ml.shape[-1] // 2
    mu = ml[:, :LP]
    logvar = ml[:, LP:]

    # Widen eps [TM, latent] -> [TM, LP] with an exact 0/1 selection matmul.
    # Keeps everything lane-dense without materializing a padded eps in HBM.
    eps_wide = jnp.dot(eps_ref[...], sel_ref[...], preferred_element_type=f32)

    # Reparameterize.  z's pad lanes are don't-care: d1_w pad rows are zero.
    z = mu + eps_wide * jnp.exp(0.5 * logvar)

    # Decoder.
    h3 = jnp.maximum(
        jnp.dot(z.astype(cdt), d1_w[...],
                preferred_element_type=f32) + d1_b[...], 0.0)
    logits = jnp.dot(h3.astype(cdt), d2_w[...],
                     preferred_element_type=f32) + d2_b[...]
    # sigmoid: exp on EUP, reciprocal on EUP (no VPU divide sequence).
    recon = pl.reciprocal(1.0 + jnp.exp(-logits), approx=False)

    # Predictor: 3 activation-free Linears pre-composed into one affine.
    pred = jnp.dot(mu.astype(cdt), pc_w[...],
                   preferred_element_type=f32) + pc_b[...]

    # Lane-dense stores: recon + one concatenated aux block (mu|logvar|pred).
    recon_ref[...] = recon.astype(recon_ref.dtype)
    aux_ref[:, :2 * LP] = ml
    aux_ref[:, 2 * LP:] = pred


def vae_forward(x, eps, params, *, latent_size, n_output, use_bf16=False):
    """x: [B, input_size] f32, eps: [B, latent_size] f32 (reparam noise).

    params: list of (W[in,out], b[out]) for
      [encoder, mu, logvar, decoder1, decoder2, pred1, pred2, pred3].
    Returns (recon [B,input_size], mu [B,L], logvar [B,L], pred [B,n_output]).
    """
    # TODO(synk): torch.randn_like eps is taken as an explicit input (so the
    # result is checkable against a deterministic reference) instead of being
    # drawn in-kernel with pltpu.prng_seed / stateful_normal.
    (enc_w, enc_b), (mu_w, mu_b), (lv_w, lv_b), (d1_w, d1_b), (d2_w, d2_b), \
        (p1_w, p1_b), (p2_w, p2_b), (p3_w, p3_b) = params

    B, input_size = x.shape
    hid_e = enc_w.shape[1]
    f32 = jnp.float32
    LP = _round_up(latent_size, 128)     # padded latent width (lane-dense)
    NP = _round_up(n_output, 128)        # padded predictor output width
    AUXW = 2 * LP + NP                   # mu | logvar | pred

    def pad_to(a, rows, cols):
        return jnp.pad(a, ((0, rows - a.shape[0]), (0, cols - a.shape[1])))

    def bias_row(b, width=None):
        b = b.reshape(1, -1)
        if width is not None and width != b.shape[1]:
            b = jnp.pad(b, ((0, 0), (0, width - b.shape[1])))
        return b

    # Fused mu|logvar head weights/bias, zero-padded to lane-dense widths.
    ml_w = jnp.concatenate(
        [pad_to(mu_w, hid_e, LP), pad_to(lv_w, hid_e, LP)], axis=1)
    ml_b = jnp.concatenate([bias_row(mu_b, LP), bias_row(lv_b, LP)], axis=1)

    # Decoder layer 1 with zero rows for the latent pad lanes (keeps z's pad
    # lanes out of the math).
    d1_w_p = pad_to(d1_w, LP, d1_w.shape[1])

    # Activation-free predictor chain collapsed to one affine (exact algebra).
    pc_w_full = p1_w @ p2_w @ p3_w                          # [latent, n_output]
    pc_b_full = p1_b @ p2_w @ p3_w + p2_b @ p3_w + p3_b     # [n_output]
    pc_w = pad_to(pc_w_full, LP, NP)
    pc_b = bias_row(pc_b_full, NP)

    # 0/1 selection matrix widening eps [*, latent] -> [*, LP] on the MXU.
    sel = pad_to(jnp.eye(latent_size, dtype=f32), latent_size, LP)

    # Optional bf16 MXU operands (weights cast once here; activations cast in
    # the kernel).  Biases stay f32 and are added to the f32 accumulator.
    cdt = jnp.bfloat16 if use_bf16 else f32
    enc_w_c = enc_w.astype(cdt)
    ml_w_c = ml_w.astype(cdt)
    d1_w_c = d1_w_p.astype(cdt)
    d2_w_c = d2_w.astype(cdt)
    pc_w_c = pc_w.astype(cdt)

    enc_b2 = bias_row(enc_b)
    d1_b2 = bias_row(d1_b)
    d2_b2 = bias_row(d2_b)

    TM = _pick_tm(B)
    grid = (pl.cdiv(B, TM),)

    def row_spec(width):   # batch-tiled arrays
        return pl.BlockSpec((TM, width), lambda i: (i, 0))

    def resident(arr):     # weights/biases: constant block index -> DMA once
        return pl.BlockSpec(arr.shape, lambda i: (0, 0))

    out_shape = (
        jax.ShapeDtypeStruct((B, input_size), x.dtype),   # recon
        jax.ShapeDtypeStruct((B, AUXW), f32),             # mu | logvar | pred
    )

    recon, aux = pl.pallas_call(
        _vae_kernel,
        out_shape=out_shape,
        grid=grid,
        in_specs=[
            row_spec(input_size),            # x
            row_spec(latent_size),           # eps (unpadded, real width)
            resident(sel),
            resident(enc_w_c), resident(enc_b2),
            resident(ml_w_c), resident(ml_b),
            resident(d1_w_c), resident(d1_b2),
            resident(d2_w_c), resident(d2_b2),
            resident(pc_w_c), resident(pc_b),
        ],
        out_specs=(row_spec(input_size), row_spec(AUXW)),
        # Batch axis is embarrassingly parallel -> megacore shard on v7x.
        compiler_params=pltpu.CompilerParams(
            dimension_semantics=("parallel",)),
    )(x, eps, sel,
      enc_w_c, enc_b2, ml_w_c, ml_b,
      d1_w_c, d1_b2, d2_w_c, d2_b2, pc_w_c, pc_b)

    mu = aux[:, :latent_size]
    logvar = aux[:, LP:LP + latent_size]
    pred = aux[:, 2 * LP:2 * LP + n_output]
    return recon, mu, logvar, pred


def vae_reference(x, eps, params):
    """Plain-JAX reference with the PyTorch module's exact math."""
    (enc_w, enc_b), (mu_w, mu_b), (lv_w, lv_b), (d1_w, d1_b), (d2_w, d2_b), \
        (p1_w, p1_b), (p2_w, p2_b), (p3_w, p3_b) = params
    h1 = jnp.maximum(x @ enc_w + enc_b, 0.0)
    mu = h1 @ mu_w + mu_b
    logvar = h1 @ lv_w + lv_b
    z = mu + eps * jnp.exp(0.5 * logvar)
    h3 = jnp.maximum(z @ d1_w + d1_b, 0.0)
    recon = 1.0 / (1.0 + jnp.exp(-(h3 @ d2_w + d2_b)))
    pred = ((mu @ p1_w + p1_b) @ p2_w + p2_b) @ p3_w + p3_b
    return recon, mu, logvar, pred


def init_params(key, *, input_size=256, latent_size=16,
                encoder=(128,), decoder=(128,), predictor=(128, 128),
                n_output=3):
    """nn.Linear-style U(-1/sqrt(in), 1/sqrt(in)); weights stored as [in,out]."""
    assert len(encoder) == 1 and len(decoder) == 1 and len(predictor) == 2

    def linear(k, fan_in, fan_out):
        kw, kb = jax.random.split(k)
        bound = 1.0 / (fan_in ** 0.5)
        w = jax.random.uniform(kw, (fan_in, fan_out), jnp.float32,
                               minval=-bound, maxval=bound)
        b = jax.random.uniform(kb, (fan_out,), jnp.float32,
                               minval=-bound, maxval=bound)
        return w, b

    keys = jax.random.split(key, 8)
    return [
        linear(keys[0], input_size, encoder[0]),      # encoder
        linear(keys[1], encoder[0], latent_size),     # mu head
        linear(keys[2], encoder[0], latent_size),     # logvar head
        linear(keys[3], latent_size, decoder[0]),     # decoder layer 1
        linear(keys[4], decoder[0], input_size),      # decoder layer 2
        linear(keys[5], latent_size, predictor[0]),   # predictor layer 1
        linear(keys[6], predictor[0], predictor[1]),  # predictor layer 2
        linear(keys[7], predictor[1], n_output),      # predictor layer 3
    ]


def _check(outs, refs, B, input_size, latent, n_output):
    recon, mu, logvar, pred = outs
    r_recon, r_mu, r_lv, r_pred = refs
    assert recon.shape == (B, input_size)
    assert mu.shape == (B, latent) and logvar.shape == (B, latent)
    assert pred.shape == (B, n_output)
    assert jnp.allclose(recon, r_recon, atol=1e-4, rtol=1e-4)
    assert jnp.allclose(mu, r_mu, atol=1e-4, rtol=1e-4)
    assert jnp.allclose(logvar, r_lv, atol=1e-4, rtol=1e-4)
    assert jnp.allclose(pred, r_pred, atol=1e-4, rtol=1e-4)


if __name__ == "__main__":
    key = jax.random.PRNGKey(0)
    kx, keps, kparams, kx2, keps2 = jax.random.split(key, 5)

    B, INPUT_SIZE, LATENT, N_OUTPUT = 8, 256, 16, 3
    params = init_params(kparams, input_size=INPUT_SIZE, latent_size=LATENT,
                         n_output=N_OUTPUT)

    # Small single-tile batch.
    x = jax.random.normal(kx, (B, INPUT_SIZE), jnp.float32)
    eps = jax.random.normal(keps, (B, LATENT), jnp.float32)
    outs = jax.block_until_ready(
        vae_forward(x, eps, params, latent_size=LATENT, n_output=N_OUTPUT))
    _check(outs, vae_reference(x, eps, params), B, INPUT_SIZE, LATENT, N_OUTPUT)

    # Multi-step grid with a ragged last batch tile (exercises the tiled /
    # edge-block path the review asked to verify).
    B2 = 530
    x2 = jax.random.normal(kx2, (B2, INPUT_SIZE), jnp.float32)
    eps2 = jax.random.normal(keps2, (B2, LATENT), jnp.float32)
    outs2 = jax.block_until_ready(
        vae_forward(x2, eps2, params, latent_size=LATENT, n_output=N_OUTPUT))
    _check(outs2, vae_reference(x2, eps2, params),
           B2, INPUT_SIZE, LATENT, N_OUTPUT)

    print("KERNEL_OK")
</pallas_src>

<mosaic_0001>
module attributes {stable_mosaic.version = 11 : i64} {
  func.func @_vae_kernel(%arg0: i32, %arg1: memref<8x256xf32, #tpu.memory_space<vmem>>, %arg2: memref<8x16xf32, #tpu.memory_space<vmem>>, %arg3: memref<16x128xf32, #tpu.memory_space<vmem>>, %arg4: memref<256x128xf32, #tpu.memory_space<vmem>>, %arg5: memref<1x128xf32, #tpu.memory_space<vmem>>, %arg6: memref<128x256xf32, #tpu.memory_space<vmem>>, %arg7: memref<1x256xf32, #tpu.memory_space<vmem>>, %arg8: memref<128x128xf32, #tpu.memory_space<vmem>>, %arg9: memref<1x128xf32, #tpu.memory_space<vmem>>, %arg10: memref<128x256xf32, #tpu.memory_space<vmem>>, %arg11: memref<1x256xf32, #tpu.memory_space<vmem>>, %arg12: memref<128x128xf32, #tpu.memory_space<vmem>>, %arg13: memref<1x128xf32, #tpu.memory_space<vmem>>, %arg14: memref<8x256xf32, #tpu.memory_space<vmem>>, %arg15: memref<8x384xf32, #tpu.memory_space<vmem>>) attributes {dimension_semantics = [#tpu.dimension_semantics<parallel>], iteration_bounds = array<i64: 1>, scalar_prefetch = 0 : i64, scratch_operands = 0 : i64, tpu.core_type = #tpu.core_type<tc>, window_params = [{transform_indices = @transform_0, window_bounds = array<i64: 8, 256>}, {transform_indices = @transform_1, window_bounds = array<i64: 8, 16>}, {pipeline_mode = #tpu.pipeline_mode<synchronous>, transform_indices = @transform_2, window_bounds = array<i64: 16, 128>}, {pipeline_mode = #tpu.pipeline_mode<synchronous>, transform_indices = @transform_3, window_bounds = array<i64: 256, 128>}, {pipeline_mode = #tpu.pipeline_mode<synchronous>, transform_indices = @transform_4, window_bounds = array<i64: 1, 128>}, {pipeline_mode = #tpu.pipeline_mode<synchronous>, transform_indices = @transform_5, window_bounds = array<i64: 128, 256>}, {pipeline_mode = #tpu.pipeline_mode<synchronous>, transform_indices = @transform_6, window_bounds = array<i64: 1, 256>}, {pipeline_mode = #tpu.pipeline_mode<synchronous>, transform_indices = @transform_7, window_bounds = array<i64: 128, 128>}, {pipeline_mode = #tpu.pipeline_mode<synchronous>, transform_indices = @transform_8, window_bounds = array<i64: 1, 128>}, {pipeline_mode = #tpu.pipeline_mode<synchronous>, transform_indices = @transform_9, window_bounds = array<i64: 128, 256>}, {pipeline_mode = #tpu.pipeline_mode<synchronous>, transform_indices = @transform_10, window_bounds = array<i64: 1, 256>}, {pipeline_mode = #tpu.pipeline_mode<synchronous>, transform_indices = @transform_11, window_bounds = array<i64: 128, 128>}, {pipeline_mode = #tpu.pipeline_mode<synchronous>, transform_indices = @transform_12, window_bounds = array<i64: 1, 128>}, {transform_indices = @transform_13, window_bounds = array<i64: 8, 256>}, {transform_indices = @transform_14, window_bounds = array<i64: 8, 384>}]} {
    %c0 = arith.constant 0 : index
    %c0_0 = arith.constant 0 : index
    %0 = vector.load %arg1[%c0, %c0_0] : memref<8x256xf32, #tpu.memory_space<vmem>>, vector<8x256xf32>
    %c0_1 = arith.constant 0 : index
    %c0_2 = arith.constant 0 : index
    %1 = vector.load %arg4[%c0_1, %c0_2] : memref<256x128xf32, #tpu.memory_space<vmem>>, vector<256x128xf32>
    %cst = arith.constant dense<0.000000e+00> : vector<8x128xf32>
    %2 = tpu.matmul %0, %1, %cst {dimension_numbers = #tpu.dot_dimension_numbers<[1], [0], [0], [1], [0, 0, 1, 1], [], []>} : vector<8x256xf32>, vector<256x128xf32>, vector<8x128xf32> -> vector<8x128xf32>
    %c0_3 = arith.constant 0 : index
    %c0_4 = arith.constant 0 : index
    %3 = vector.load %arg5[%c0_3, %c0_4] : memref<1x128xf32, #tpu.memory_space<vmem>>, vector<1x128xf32>
    %4 = vector.broadcast %3 : vector<1x128xf32> to vector<8x128xf32>
    %5 = arith.addf %2, %4 : vector<8x128xf32>
    %cst_5 = arith.constant 0.000000e+00 : f32
    %6 = vector.broadcast %cst_5 : f32 to vector<8x128xf32>
    %7 = arith.maximumf %5, %6 : vector<8x128xf32>
    %c0_6 = arith.constant 0 : index
    %c0_7 = arith.constant 0 : index
    %8 = vector.load %arg6[%c0_6, %c0_7] : memref<128x256xf32, #tpu.memory_space<vmem>>, vector<128x256xf32>
    %cst_8 = arith.constant dense<0.000000e+00> : vector<8x256xf32>
    %9 = tpu.matmul %7, %8, %cst_8 {dimension_numbers = #tpu.dot_dimension_numbers<[1], [0], [0], [1], [0, 0, 1, 1], [], []>} : vector<8x128xf32>, vector<128x256xf32>, vector<8x256xf32> -> vector<8x256xf32>
    %c0_9 = arith.constant 0 : index
    %c0_10 = arith.constant 0 : index
    %10 = vector.load %arg7[%c0_9, %c0_10] : memref<1x256xf32, #tpu.memory_space<vmem>>, vector<1x256xf32>
    %11 = vector.broadcast %10 : vector<1x256xf32> to vector<8x256xf32>
    %12 = arith.addf %9, %11 : vector<8x256xf32>
    %13 = vector.extract_strided_slice %12 {offsets = [0, 0], sizes = [8, 128], strides = [1, 1]} : vector<8x256xf32> to vector<8x128xf32>
    %14 = vector.extract_strided_slice %12 {offsets = [0, 128], sizes = [8, 128], strides = [1, 1]} : vector<8x256xf32> to vector<8x128xf32>
    %c0_11 = arith.constant 0 : index
    %c0_12 = arith.constant 0 : index
    %15 = vector.load %arg2[%c0_11, %c0_12] : memref<8x16xf32, #tpu.memory_space<vmem>>, vector<8x16xf32>
    %c0_13 = arith.constant 0 : index
    %c0_14 = arith.constant 0 : index
    %16 = vector.load %arg3[%c0_13, %c0_14] : memref<16x128xf32, #tpu.memory_space<vmem>>, vector<16x128xf32>
    %cst_15 = arith.constant dense<0.000000e+00> : vector<8x128xf32>
    %17 = tpu.matmul %15, %16, %cst_15 {dimension_numbers = #tpu.dot_dimension_numbers<[1], [0], [0], [1], [0, 0, 1, 1], [], []>} : vector<8x16xf32>, vector<16x128xf32>, vector<8x128xf32> -> vector<8x128xf32>
    %cst_16 = arith.constant 5.000000e-01 : f32
    %18 = vector.broadcast %cst_16 : f32 to vector<8x128xf32>
    %19 = arith.mulf %18, %14 : vector<8x128xf32>
    %20 = math.exp %19 : vector<8x128xf32>
    %21 = arith.mulf %17, %20 : vector<8x128xf32>
    %22 = arith.addf %13, %21 : vector<8x128xf32>
    %c0_17 = arith.constant 0 : index
    %c0_18 = arith.constant 0 : index
    %23 = vector.load %arg8[%c0_17, %c0_18] : memref<128x128xf32, #tpu.memory_space<vmem>>, vector<128x128xf32>
    %cst_19 = arith.constant dense<0.000000e+00> : vector<8x128xf32>
    %24 = tpu.matmul %22, %23, %cst_19 {dimension_numbers = #tpu.dot_dimension_numbers<[1], [0], [0], [1], [0, 0, 1, 1], [], []>} : vector<8x128xf32>, vector<128x128xf32>, vector<8x128xf32> -> vector<8x128xf32>
    %c0_20 = arith.constant 0 : index
    %c0_21 = arith.constant 0 : index
    %25 = vector.load %arg9[%c0_20, %c0_21] : memref<1x128xf32, #tpu.memory_space<vmem>>, vector<1x128xf32>
    %26 = vector.broadcast %25 : vector<1x128xf32> to vector<8x128xf32>
    %27 = arith.addf %24, %26 : vector<8x128xf32>
    %cst_22 = arith.constant 0.000000e+00 : f32
    %28 = vector.broadcast %cst_22 : f32 to vector<8x128xf32>
    %29 = arith.maximumf %27, %28 : vector<8x128xf32>
    %c0_23 = arith.constant 0 : index
    %c0_24 = arith.constant 0 : index
    %30 = vector.load %arg10[%c0_23, %c0_24] : memref<128x256xf32, #tpu.memory_space<vmem>>, vector<128x256xf32>
    %cst_25 = arith.constant dense<0.000000e+00> : vector<8x256xf32>
    %31 = tpu.matmul %29, %30, %cst_25 {dimension_numbers = #tpu.dot_dimension_numbers<[1], [0], [0], [1], [0, 0, 1, 1], [], []>} : vector<8x128xf32>, vector<128x256xf32>, vector<8x256xf32> -> vector<8x256xf32>
    %c0_26 = arith.constant 0 : index
    %c0_27 = arith.constant 0 : index
    %32 = vector.load %arg11[%c0_26, %c0_27] : memref<1x256xf32, #tpu.memory_space<vmem>>, vector<1x256xf32>
    %33 = vector.broadcast %32 : vector<1x256xf32> to vector<8x256xf32>
    %34 = arith.addf %31, %33 : vector<8x256xf32>
    %cst_28 = arith.constant 0.000000e+00 : f32
    %35 = vector.broadcast %cst_28 : f32 to vector<8x256xf32>
    %36 = arith.subf %35, %34 : vector<8x256xf32>
    %37 = math.exp %36 : vector<8x256xf32>
    %cst_29 = arith.constant 1.000000e+00 : f32
    %38 = vector.broadcast %cst_29 : f32 to vector<8x256xf32>
    %39 = arith.addf %38, %37 : vector<8x256xf32>
    %40 = tpu.reciprocal %39 : vector<8x256xf32> -> vector<8x256xf32>
    %c0_30 = arith.constant 0 : index
    %c0_31 = arith.constant 0 : index
    %41 = vector.load %arg12[%c0_30, %c0_31] : memref<128x128xf32, #tpu.memory_space<vmem>>, vector<128x128xf32>
    %cst_32 = arith.constant dense<0.000000e+00> : vector<8x128xf32>
    %42 = tpu.matmul %13, %41, %cst_32 {dimension_numbers = #tpu.dot_dimension_numbers<[1], [0], [0], [1], [0, 0, 1, 1], [], []>} : vector<8x128xf32>, vector<128x128xf32>, vector<8x128xf32> -> vector<8x128xf32>
    %c0_33 = arith.constant 0 : index
    %c0_34 = arith.constant 0 : index
    %43 = vector.load %arg13[%c0_33, %c0_34] : memref<1x128xf32, #tpu.memory_space<vmem>>, vector<1x128xf32>
    %44 = vector.broadcast %43 : vector<1x128xf32> to vector<8x128xf32>
    %45 = arith.addf %42, %44 : vector<8x128xf32>
    %c0_35 = arith.constant 0 : index
    %c0_36 = arith.constant 0 : index
    %46 = vector.load %arg14[%c0_35, %c0_36] : memref<8x256xf32, #tpu.memory_space<vmem>>, vector<8x256xf32>
    tpu.vector_store %arg14[%c0_35, %c0_36], %40 {strides = array<i32>} : memref<8x256xf32, #tpu.memory_space<vmem>>, vector<8x256xf32>,
    %c0_37 = arith.constant 0 : index
    %c0_38 = arith.constant 0 : index
    %47 = vector.load %arg15[%c0_37, %c0_38] : memref<8x384xf32, #tpu.memory_space<vmem>>, vector<8x256xf32>
    tpu.vector_store %arg15[%c0_37, %c0_38], %12 {strides = array<i32>} : memref<8x384xf32, #tpu.memory_space<vmem>>, vector<8x256xf32>,
    %c0_39 = arith.constant 0 : index
    %c256 = arith.constant 256 : index
    %48 = vector.load %arg15[%c0_39, %c256] : memref<8x384xf32, #tpu.memory_space<vmem>>, vector<8x128xf32>
    tpu.vector_store %arg15[%c0_39, %c256], %45 {strides = array<i32>} : memref<8x384xf32, #tpu.memory_space<vmem>>, vector<8x128xf32>,
    return
  }
  func.func @transform_0(%arg0: i32) -> (i32, i32) {
    %c0_i32 = arith.constant 0 : i32
    %c0_i32_0 = arith.constant 0 : i32
    return %arg0, %c0_i32 : i32, i32
  }
  func.func @transform_1(%arg0: i32) -> (i32, i32) {
    %c0_i32 = arith.constant 0 : i32
    %c0_i32_0 = arith.constant 0 : i32
    return %arg0, %c0_i32 : i32, i32
  }
  func.func @transform_2(%arg0: i32) -> (i32, i32) {
    %c0_i32 = arith.constant 0 : i32
    %c0_i32_0 = arith.constant 0 : i32
    %c0_i32_1 = arith.constant 0 : i32
    return %c0_i32, %c0_i32_0 : i32, i32
  }
  func.func @transform_3(%arg0: i32) -> (i32, i32) {
    %c0_i32 = arith.constant 0 : i32
    %c0_i32_0 = arith.constant 0 : i32
    %c0_i32_1 = arith.constant 0 : i32
    return %c0_i32, %c0_i32_0 : i32, i32
  }
  func.func @transform_4(%arg0: i32) -> (i32, i32) {
    %c0_i32 = arith.constant 0 : i32
    %c0_i32_0 = arith.constant 0 : i32
    %c0_i32_1 = arith.constant 0 : i32
    return %c0_i32, %c0_i32_0 : i32, i32
  }
  func.func @transform_5(%arg0: i32) -> (i32, i32) {
    %c0_i32 = arith.constant 0 : i32
    %c0_i32_0 = arith.constant 0 : i32
    %c0_i32_1 = arith.constant 0 : i32
    return %c0_i32, %c0_i32_0 : i32, i32
  }
  func.func @transform_6(%arg0: i32) -> (i32, i32) {
    %c0_i32 = arith.constant 0 : i32
    %c0_i32_0 = arith.constant 0 : i32
    %c0_i32_1 = arith.constant 0 : i32
    return %c0_i32, %c0_i32_0 : i32, i32
  }
  func.func @transform_7(%arg0: i32) -> (i32, i32) {
    %c0_i32 = arith.constant 0 : i32
    %c0_i32_0 = arith.constant 0 : i32
    %c0_i32_1 = arith.constant 0 : i32
    return %c0_i32, %c0_i32_0 : i32, i32
  }
  func.func @transform_8(%arg0: i32) -> (i32, i32) {
    %c0_i32 = arith.constant 0 : i32
    %c0_i32_0 = arith.constant 0 : i32
    %c0_i32_1 = arith.constant 0 : i32
    return %c0_i32, %c0_i32_0 : i32, i32
  }
  func.func @transform_9(%arg0: i32) -> (i32, i32) {
    %c0_i32 = arith.constant 0 : i32
    %c0_i32_0 = arith.constant 0 : i32
    %c0_i32_1 = arith.constant 0 : i32
    return %c0_i32, %c0_i32_0 : i32, i32
  }
  func.func @transform_10(%arg0: i32) -> (i32, i32) {
    %c0_i32 = arith.constant 0 : i32
    %c0_i32_0 = arith.constant 0 : i32
    %c0_i32_1 = arith.constant 0 : i32
    return %c0_i32, %c0_i32_0 : i32, i32
  }
  func.func @transform_11(%arg0: i32) -> (i32, i32) {
    %c0_i32 = arith.constant 0 : i32
    %c0_i32_0 = arith.constant 0 : i32
    %c0_i32_1 = arith.constant 0 : i32
    return %c0_i32, %c0_i32_0 : i32, i32
  }
  func.func @transform_12(%arg0: i32) -> (i32, i32) {
    %c0_i32 = arith.constant 0 : i32
    %c0_i32_0 = arith.constant 0 : i32
    %c0_i32_1 = arith.constant 0 : i32
    return %c0_i32, %c0_i32_0 : i32, i32
  }
  func.func @transform_13(%arg0: i32) -> (i32, i32) {
    %c0_i32 = arith.constant 0 : i32
    %c0_i32_0 = arith.constant 0 : i32
    return %arg0, %c0_i32 : i32, i32
  }
  func.func @transform_14(%arg0: i32) -> (i32, i32) {
    %c0_i32 = arith.constant 0 : i32
    %c0_i32_0 = arith.constant 0 : i32
    return %arg0, %c0_i32 : i32, i32
  }
}

</mosaic_0001>

<llo_original>
// kernel: tpu_custom_call.1
$region0: #{tpu_custom_call.1}
  #allocation0 [shape = 'u32[]', space=smem, size = 0x4, offset = 0x4, fixed_abs, tag = 'smem constant byte address 0x4 - core index']
  #allocation1 [shape = 'u32[144,128]{1,0:T(1,128)}', space=vmem, size = 0x12000, scoped, tag = 'internal scratch']
  %s0 = inlined_call_operand.hbm [shape: f32[8,256], index: 0, kind: input, shape index: {}]
  %s1 = inlined_call_operand.hbm [shape: f32[8,16], index: 1, kind: input, shape index: {}]
  %s2 = inlined_call_operand.hbm [shape: f32[16,128], index: 2, kind: input, shape index: {}]
  %s3 = inlined_call_operand.hbm [shape: f32[256,128], index: 3, kind: input, shape index: {}]
  %s4 = inlined_call_operand.vmem [shape: f32[1,128], index: 4, kind: input, shape index: {}]
  %s5 = inlined_call_operand.hbm [shape: f32[128,256], index: 5, kind: input, shape index: {}]
  %s6 = inlined_call_operand.vmem [shape: f32[1,256], index: 6, kind: input, shape index: {}]
  %s7 = inlined_call_operand.hbm [shape: f32[128,128], index: 7, kind: input, shape index: {}]
  %s8 = inlined_call_operand.vmem [shape: f32[1,128], index: 8, kind: input, shape index: {}]
  %s9 = inlined_call_operand.hbm [shape: f32[128,256], index: 9, kind: input, shape index: {}]
  %s10 = inlined_call_operand.vmem [shape: f32[1,256], index: 10, kind: input, shape index: {}]
  %s11 = inlined_call_operand.hbm [shape: f32[128,128], index: 11, kind: input, shape index: {}]
  %s12 = inlined_call_operand.vmem [shape: f32[1,128], index: 12, kind: input, shape index: {}]
  %s13 = inlined_call_operand.hbm [shape: f32[8,256], index: 13, kind: output, shape index: {0}]
  %s14 = inlined_call_operand.hbm [shape: f32[8,384], index: 14, kind: output, shape index: {1}]
  %15 = xla_tuple %s13, %s14
  %s16 = sld [smem:[#allocation0]]
  $region102: #{tpu_custom_call.1} parent=0
    _
  %s18 = ssub.s32 1, %s16
  %s19 = scalar_select 0, %s18, %s16
  $region1: #{tpu_custom_call.1} parent=0
    #allocation2 [shape = 'u8[8192]{0}', space=vmem, size = 0x2000, scoped, tag = 'input window, operand 0, single buffered']
    #allocation3 [shape = 's32[1]{0}', space=sflag, size = 0x4, scoped, tag = 'scoped memory for tpu_custom_call.1']
    #allocation4 [shape = 's32[1]{0}', space=sflag, size = 0x4, scoped, tag = 'scoped memory for tpu_custom_call.1']
    #allocation5 [shape = 'u8[4096]{0}', space=vmem, size = 0x1000, scoped, tag = 'input window, operand 1, single buffered']
    #allocation6 [shape = 's32[1]{0}', space=sflag, size = 0x4, scoped, tag = 'scoped memory for tpu_custom_call.1']
    #allocation7 [shape = 'u8[8192]{0}', space=vmem, size = 0x2000, scoped, tag = 'input window, operand 2, single buffered']
    #allocation8 [shape = 'u8[131072]{0}', space=vmem, size = 0x20000, scoped, tag = 'input window, operand 3, single buffered']
    #allocation9 [shape = 's32[1]{0}', space=sflag, size = 0x4, scoped, tag = 'scoped memory for tpu_custom_call.1']
    #allocation10 [shape = 'u8[131072]{0}', space=vmem, size = 0x20000, scoped, tag = 'input window, operand 5, single buffered']
    #allocation11 [shape = 'u8[65536]{0}', space=vmem, size = 0x10000, scoped, tag = 'input window, operand 7, single buffered']
    #allocation12 [shape = 's32[1]{0}', space=sflag, size = 0x4, scoped, tag = 'scoped memory for tpu_custom_call.1']
    #allocation13 [shape = 'u8[131072]{0}', space=vmem, size = 0x20000, scoped, tag = 'input window, operand 9, single buffered']
    #allocation14 [shape = 'u8[65536]{0}', space=vmem, size = 0x10000, scoped, tag = 'input window, operand 11, single buffered']
    #allocation15 [shape = 's32[1]{0}', space=sflag, size = 0x4, scoped, tag = 'scoped memory for tpu_custom_call.1']
    #allocation16 [shape = 'u8[8192]{0}', space=vmem, size = 0x2000, scoped, tag = 'output window, operand 0, single buffered']
    #allocation17 [shape = 'u8[12288]{0}', space=vmem, size = 0x3000, scoped, tag = 'output window, operand 1, single buffered']
    #allocation18 [shape = 's32[1]{0}', space=sflag, size = 0x4, scoped, tag = 'scoped memory for tpu_custom_call.1']
    %20 = vsyncpa [#allocation3], 0
    %21 = vsyncpa [#allocation6], 0
    %22 = vsyncpa [#allocation9], 0
    %23 = vsyncpa [#allocation12], 0
    %24 = vsyncpa [#allocation15], 0
    %25 = vsyncpa [#allocation4], 0
    %26 = vsyncpa [#allocation18], 0
    // Predicated region
    $region2: #{tpu_custom_call.1} parent=1 // pred_check
      _
    $region3: #{tpu_custom_call.1} parent=1 // pred_check_branch
      %28 = sbr.rel (0) target = $region5
    $region4: #{tpu_custom_call.1} parent=1 // pred_region
      %s30 = ssub.s32 256, 256
      %31 = vsyncadd [#allocation3], %s30
      %s33 = sshll.u32 [#allocation2], 4
      %s34 = int_to_ptr.vmem [resolvable:$true] %s33
      %36 = dma.hbm_to_vmem [thread:$0]  %s0, 256, %s34, [#allocation3]
    $region5: #{tpu_custom_call.1} parent=1 // pred_fallthru
      _
    // Predicated region
    $region6: #{tpu_custom_call.1} parent=1 // pred_check
      _
    $region7: #{tpu_custom_call.1} parent=1 // pred_check_branch
      %38 = sbr.rel (0) target = $region9
    $region8: #{tpu_custom_call.1} parent=1 // pred_region
      %s40 = ssub.s32 128, 128
      %41 = vsyncadd [#allocation6], %s40
      %s43 = sshll.u32 [#allocation5], 4
      %s44 = int_to_ptr.vmem [resolvable:$true] %s43
      %46 = dma.hbm_to_vmem [thread:$0]  %s1, 128, %s44, [#allocation6]
    $region9: #{tpu_custom_call.1} parent=1 // pred_fallthru
      _
    // Predicated region
    $region10: #{tpu_custom_call.1} parent=1 // pred_check
      _
    $region11: #{tpu_custom_call.1} parent=1 // pred_check_branch
      %48 = sbr.rel (0) target = $region13
    $region12: #{tpu_custom_call.1} parent=1 // pred_region
      %s50 = ssub.s32 256, 256
      %51 = vsyncadd [#allocation6], %s50
      %s52 = sshll.u32 [#allocation7], 4
      %s53 = int_to_ptr.vmem [resolvable:$true] %s52
      %58 = dma.hbm_to_vmem [thread:$0]  %s2, 256, %s53, [#allocation6], 128, 128, 8
    $region13: #{tpu_custom_call.1} parent=1 // pred_fallthru
      _
    // Predicated region
    $region14: #{tpu_custom_call.1} parent=1 // pred_check
      _
    $region15: #{tpu_custom_call.1} parent=1 // pred_check_branch
      %60 = sbr.rel (0) target = $region17
    $region16: #{tpu_custom_call.1} parent=1 // pred_region
      %s62 = ssub.s32 4096, 4096
      %63 = vsyncadd [#allocation9], %s62
      %s64 = sshll.u32 [#allocation8], 4
      %s65 = int_to_ptr.vmem [resolvable:$true] %s64
      %70 = dma.hbm_to_vmem [thread:$0]  %s3, 4096, %s65, [#allocation9], 128, 128, 8
    $region17: #{tpu_custom_call.1} parent=1 // pred_fallthru
      _
    // Predicated region
    $region18: #{tpu_custom_call.1} parent=1 // pred_check
      _
    $region19: #{tpu_custom_call.1} parent=1 // pred_check_branch
      %72 = sbr.rel (0) target = $region21
    $region20: #{tpu_custom_call.1} parent=1 // pred_region
      _
    $region21: #{tpu_custom_call.1} parent=1 // pred_fallthru
      _
    // Predicated region
    $region22: #{tpu_custom_call.1} parent=1 // pred_check
      _
    $region23: #{tpu_custom_call.1} parent=1 // pred_check_branch
      %74 = sbr.rel (0) target = $region25
    $region24: #{tpu_custom_call.1} parent=1 // pred_region
      %s76 = ssub.s32 4096, 4096
      %77 = vsyncadd [#allocation9], %s76
      %s78 = sshll.u32 [#allocation10], 4
      %s79 = int_to_ptr.vmem [resolvable:$true] %s78
      %84 = dma.hbm_to_vmem [thread:$0]  %s5, 4096, %s79, [#allocation9], 256, 256, 16
    $region25: #{tpu_custom_call.1} parent=1 // pred_fallthru
      _
    // Predicated region
    $region26: #{tpu_custom_call.1} parent=1 // pred_check
      _
    $region27: #{tpu_custom_call.1} parent=1 // pred_check_branch
      %86 = sbr.rel (0) target = $region29
    $region28: #{tpu_custom_call.1} parent=1 // pred_region
      _
    $region29: #{tpu_custom_call.1} parent=1 // pred_fallthru
      _
    // Predicated region
    $region30: #{tpu_custom_call.1} parent=1 // pred_check
      _
    $region31: #{tpu_custom_call.1} parent=1 // pred_check_branch
      %88 = sbr.rel (0) target = $region33
    $region32: #{tpu_custom_call.1} parent=1 // pred_region
      %s90 = ssub.s32 2048, 2048
      %91 = vsyncadd [#allocation12], %s90
      %s92 = sshll.u32 [#allocation11], 4
      %s93 = int_to_ptr.vmem [resolvable:$true] %s92
      %98 = dma.hbm_to_vmem [thread:$0]  %s7, 2048, %s93, [#allocation12], 128, 128, 8
    $region33: #{tpu_custom_call.1} parent=1 // pred_fallthru
      _
    // Predicated region
    $region34: #{tpu_custom_call.1} parent=1 // pred_check
      _
    $region35: #{tpu_custom_call.1} parent=1 // pred_check_branch
      %100 = sbr.rel (0) target = $region37
    $region36: #{tpu_custom_call.1} parent=1 // pred_region
      _
    $region37: #{tpu_custom_call.1} parent=1 // pred_fallthru
      _
    // Predicated region
    $region38: #{tpu_custom_call.1} parent=1 // pred_check
      _
    $region39: #{tpu_custom_call.1} parent=1 // pred_check_branch
      %102 = sbr.rel (0) target = $region41
    $region40: #{tpu_custom_call.1} parent=1 // pred_region
      %s104 = ssub.s32 4096, 4096
      %105 = vsyncadd [#allocation12], %s104
      %s106 = sshll.u32 [#allocation13], 4
      %s107 = int_to_ptr.vmem [resolvable:$true] %s106
      %112 = dma.hbm_to_vmem [thread:$0]  %s9, 4096, %s107, [#allocation12], 256, 256, 16
    $region41: #{tpu_custom_call.1} parent=1 // pred_fallthru
      _
    // Predicated region
    $region42: #{tpu_custom_call.1} parent=1 // pred_check
      _
    $region43: #{tpu_custom_call.1} parent=1 // pred_check_branch
      %114 = sbr.rel (0) target = $region45
    $region44: #{tpu_custom_call.1} parent=1 // pred_region
      _
    $region45: #{tpu_custom_call.1} parent=1 // pred_fallthru
      _
    // Predicated region
    $region46: #{tpu_custom_call.1} parent=1 // pred_check
      _
    $region47: #{tpu_custom_call.1} parent=1 // pred_check_branch
      %116 = sbr.rel (0) target = $region49
    $region48: #{tpu_custom_call.1} parent=1 // pred_region
      %s118 = ssub.s32 2048, 2048
      %119 = vsyncadd [#allocation15], %s118
      %s120 = sshll.u32 [#allocation14], 4
      %s121 = int_to_ptr.vmem [resolvable:$true] %s120
      %126 = dma.hbm_to_vmem [thread:$0]  %s11, 2048, %s121, [#allocation15], 128, 128, 8
    $region49: #{tpu_custom_call.1} parent=1 // pred_fallthru
      _
    // Predicated region
    $region50: #{tpu_custom_call.1} parent=1 // pred_check
      _
    $region51: #{tpu_custom_call.1} parent=1 // pred_check_branch
      %128 = sbr.rel (0) target = $region53
    $region52: #{tpu_custom_call.1} parent=1 // pred_region
      _
    $region53: #{tpu_custom_call.1} parent=1 // pred_fallthru
      _
    // Predicated region
    $region54: #{tpu_custom_call.1} parent=1 // pred_check
      _
    $region55: #{tpu_custom_call.1} parent=1 // pred_check_branch
      %130 = sbr.rel (0) target = $region57
    $region56: #{tpu_custom_call.1} parent=1 // pred_region
      %131 = dma.done [#allocation3], 256
    $region57: #{tpu_custom_call.1} parent=1 // pred_fallthru
      _
    // Predicated region
    $region58: #{tpu_custom_call.1} parent=1 // pred_check
      _
    $region59: #{tpu_custom_call.1} parent=1 // pred_check_branch
      %133 = sbr.rel (0) target = $region61
    $region60: #{tpu_custom_call.1} parent=1 // pred_region
      %134 = dma.done [#allocation6], 128
    $region61: #{tpu_custom_call.1} parent=1 // pred_fallthru
      _
    // Predicated region
    $region62: #{tpu_custom_call.1} parent=1 // pred_check
      _
    $region63: #{tpu_custom_call.1} parent=1 // pred_check_branch
      %136 = sbr.rel (0) target = $region65
    $region64: #{tpu_custom_call.1} parent=1 // pred_region
      %137 = dma.done [#allocation6], 256
    $region65: #{tpu_custom_call.1} parent=1 // pred_fallthru
      _
    // Predicated region
    $region66: #{tpu_custom_call.1} parent=1 // pred_check
      _
    $region67: #{tpu_custom_call.1} parent=1 // pred_check_branch
      %139 = sbr.rel (0) target = $region69
    $region68: #{tpu_custom_call.1} parent=1 // pred_region
      %140 = dma.done [#allocation9], 4096
    $region69: #{tpu_custom_call.1} parent=1 // pred_fallthru
      _
    // Predicated region
    $region70: #{tpu_custom_call.1} parent=1 // pred_check
      _
    $region71: #{tpu_custom_call.1} parent=1 // pred_check_branch
      %142 = sbr.rel (0) target = $region73
    $region72: #{tpu_custom_call.1} parent=1 // pred_region
      %143 = dma.done [#allocation9], 4096
    $region73: #{tpu_custom_call.1} parent=1 // pred_fallthru
      _
    // Predicated region
    $region74: #{tpu_custom_call.1} parent=1 // pred_check
      _
    $region75: #{tpu_custom_call.1} parent=1 // pred_check_branch
      %145 = sbr.rel (0) target = $region77
    $region76: #{tpu_custom_call.1} parent=1 // pred_region
      %146 = dma.done [#allocation12], 2048
    $region77: #{tpu_custom_call.1} parent=1 // pred_fallthru
      _
    // Predicated region
    $region78: #{tpu_custom_call.1} parent=1 // pred_check
      _
    $region79: #{tpu_custom_call.1} parent=1 // pred_check_branch
      %148 = sbr.rel (0) target = $region81
    $region80: #{tpu_custom_call.1} parent=1 // pred_region
      %149 = dma.done [#allocation12], 4096
    $region81: #{tpu_custom_call.1} parent=1 // pred_fallthru
      _
    // Predicated region
    $region82: #{tpu_custom_call.1} parent=1 // pred_check
      _
    $region83: #{tpu_custom_call.1} parent=1 // pred_check_branch
      %151 = sbr.rel (0) target = $region85
    $region84: #{tpu_custom_call.1} parent=1 // pred_region
      %152 = dma.done [#allocation15], 2048
    $region85: #{tpu_custom_call.1} parent=1 // pred_fallthru
      _
    %v153 = vld [vmem:[#allocation2] sm:$0xff]
    %v154 = vld [vmem:[#allocation2 + $0x8] sm:$0xff]
    %v155 = vld [vmem:[#allocation8] sm:$0xff]
    %v156 = vld [vmem:[#allocation8 + $0x8] sm:$0xff]
    %v157 = vld [vmem:[#allocation8 + $0x10] sm:$0xff]
    %v158 = vld [vmem:[#allocation8 + $0x18] sm:$0xff]
    %v159 = vld [vmem:[#allocation8 + $0x20] sm:$0xff]
    %v160 = vld [vmem:[#allocation8 + $0x28] sm:$0xff]
    %v161 = vld [vmem:[#allocation8 + $0x30] sm:$0xff]
    %v162 = vld [vmem:[#allocation8 + $0x38] sm:$0xff]
    %v163 = vld [vmem:[#allocation8 + $0x40] sm:$0xff]
    %v164 = vld [vmem:[#allocation8 + $0x48] sm:$0xff]
    %v165 = vld [vmem:[#allocation8 + $0x50] sm:$0xff]
    %v166 = vld [vmem:[#allocation8 + $0x58] sm:$0xff]
    %v167 = vld [vmem:[#allocation8 + $0x60] sm:$0xff]
    %v168 = vld [vmem:[#allocation8 + $0x68] sm:$0xff]
    %v169 = vld [vmem:[#allocation8 + $0x70] sm:$0xff]
    %v170 = vld [vmem:[#allocation8 + $0x78] sm:$0xff]
    %v171 = vld [vmem:[#allocation8 + $0x80] sm:$0xff]
    %v172 = vld [vmem:[#allocation8 + $0x88] sm:$0xff]
    %v173 = vld [vmem:[#allocation8 + $0x90] sm:$0xff]
    %v174 = vld [vmem:[#allocation8 + $0x98] sm:$0xff]
    %v175 = vld [vmem:[#allocation8 + $0xa0] sm:$0xff]
    %v176 = vld [vmem:[#allocation8 + $0xa8] sm:$0xff]
    %v177 = vld [vmem:[#allocation8 + $0xb0] sm:$0xff]
    %v178 = vld [vmem:[#allocation8 + $0xb8] sm:$0xff]
    %v179 = vld [vmem:[#allocation8 + $0xc0] sm:$0xff]
    %v180 = vld [vmem:[#allocation8 + $0xc8] sm:$0xff]
    %v181 = vld [vmem:[#allocation8 + $0xd0] sm:$0xff]
    %v182 = vld [vmem:[#allocation8 + $0xd8] sm:$0xff]
    %v183 = vld [vmem:[#allocation8 + $0xe0] sm:$0xff]
    %v184 = vld [vmem:[#allocation8 + $0xe8] sm:$0xff]
    %v185 = vld [vmem:[#allocation8 + $0xf0] sm:$0xff]
    %v186 = vld [vmem:[#allocation8 + $0xf8] sm:$0xff]
    %v187 = vld [vmem:[%s4] sm:$0x1]
    %v189 = vlaneseq
    %v190 = vshrl.u32 %v189, 7
    %v191 = vsub.s32 0, %v190
    %v192 = vrot.slane %v187, %v191
    %194 = vmatprep.subr.mxu0 0.0
    %195 = vmatpush1.msra.mxu0 %v170
    %196 = vmatprep.subr.mxu0 0.0
    %197 = vmatpush1.msra.mxu0 %v169
    %198 = vmatprep.subr.mxu0 0.0
    %199 = vmatpush1.msra.mxu0 %v168
    %200 = vmatprep.subr.mxu0 0.0
    %201 = vmatpush1.msra.mxu0 %v167
    %202 = vmatprep.subr.mxu0 0.0
    %203 = vmatpush1.msra.mxu0 %v166
    %204 = vmatprep.subr.mxu0 0.0
    %205 = vmatpush1.msra.mxu0 %v165
    %206 = vmatprep.subr.mxu0 0.0
    %207 = vmatpush1.msra.mxu0 %v164
    %208 = vmatprep.subr.mxu0 0.0
    %209 = vmatpush1.msra.mxu0 %v163
    %210 = vmatprep.subr.mxu0 0.0
    %211 = vmatpush1.msra.mxu0 %v162
    %212 = vmatprep.subr.mxu0 0.0
    %213 = vmatpush1.msra.mxu0 %v161
    %214 = vmatprep.subr.mxu0 0.0
    %215 = vmatpush1.msra.mxu0 %v160
    %216 = vmatprep.subr.mxu0 0.0
    %217 = vmatpush1.msra.mxu0 %v159
    %218 = vmatprep.subr.mxu0 0.0
    %219 = vmatpush1.msra.mxu0 %v158
    %220 = vmatprep.subr.mxu0 0.0
    %221 = vmatpush1.msra.mxu0 %v157
    %222 = vmatprep.subr.mxu0 0.0
    %223 = vmatpush1.msra.mxu0 %v156
    %224 = vmatprep.subr.mxu0 0.0
    %225 = vmatpush1.msra.mxu0 %v155
    %226 = vmatprep.subr.mxu0 0.0
    %227 = vmatpush2.msra.mxu0 %v186
    %228 = vmatprep.subr.mxu0 0.0
    %229 = vmatpush2.msra.mxu0 %v185
    %230 = vmatprep.subr.mxu0 0.0
    %231 = vmatpush2.msra.mxu0 %v184
    %232 = vmatprep.subr.mxu0 0.0
    %233 = vmatpush2.msra.mxu0 %v183
    %234 = vmatprep.subr.mxu0 0.0
    %235 = vmatpush2.msra.mxu0 %v182
    %236 = vmatprep.subr.mxu0 0.0
    %237 = vmatpush2.msra.mxu0 %v181
    %238 = vmatprep.subr.mxu0 0.0
    %239 = vmatpush2.msra.mxu0 %v180
    %240 = vmatprep.subr.mxu0 0.0
    %241 = vmatpush2.msra.mxu0 %v179
    %242 = vmatprep.subr.mxu0 0.0
    %243 = vmatpush2.msra.mxu0 %v178
    %244 = vmatprep.subr.mxu0 0.0
    %245 = vmatpush2.msra.mxu0 %v177
    %246 = vmatprep.subr.mxu0 0.0
    %247 = vmatpush2.msra.mxu0 %v176
    %248 = vmatprep.subr.mxu0 0.0
    %249 = vmatpush2.msra.mxu0 %v175
    %250 = vmatprep.subr.mxu0 0.0
    %251 = vmatpush2.msra.mxu0 %v174
    %252 = vmatprep.subr.mxu0 0.0
    %253 = vmatpush2.msra.mxu0 %v173
    %254 = vmatprep.subr.mxu0 0.0
    %255 = vmatpush2.msra.mxu0 %v172
    %256 = vmatprep.subr.mxu0 0.0
    %257 = vmatpush2.msra.mxu0 %v171
    %258 = vmatprep.mubr.f32.mxu0 %v154
    %259 = vmatmul.mubr.f32.gmra.mxu0 %v153
    %v260 = vpop.f32.mrf.mxu0
    %v261 = vadd.f32 %v192, %v260
    %v262 = vpop.f32.mrf.mxu0
    %263 = vdwg.mxu0
    %v264 = vmax.f32 %v261, 0.0
    %v265 = vld [vmem:[#allocation10] sm:$0xff]
    %v266 = vld [vmem:[#allocation10 + $0x8] sm:$0xff]
    %v267 = vld [vmem:[#allocation10 + $0x10] sm:$0xff]
    %v268 = vld [vmem:[#allocation10 + $0x18] sm:$0xff]
    %v269 = vld [vmem:[#allocation10 + $0x20] sm:$0xff]
    %v270 = vld [vmem:[#allocation10 + $0x28] sm:$0xff]
    %v271 = vld [vmem:[#allocation10 + $0x30] sm:$0xff]
    %v272 = vld [vmem:[#allocation10 + $0x38] sm:$0xff]
    %v273 = vld [vmem:[#allocation10 + $0x40] sm:$0xff]
    %v274 = vld [vmem:[#allocation10 + $0x48] sm:$0xff]
    %v275 = vld [vmem:[#allocation10 + $0x50] sm:$0xff]
    %v276 = vld [vmem:[#allocation10 + $0x58] sm:$0xff]
    %v277 = vld [vmem:[#allocation10 + $0x60] sm:$0xff]
    %v278 = vld [vmem:[#allocation10 + $0x68] sm:$0xff]
    %v279 = vld [vmem:[#allocation10 + $0x70] sm:$0xff]
    %v280 = vld [vmem:[#allocation10 + $0x78] sm:$0xff]
    %v281 = vld [vmem:[#allocation10 + $0x80] sm:$0xff]
    %v282 = vld [vmem:[#allocation10 + $0x88] sm:$0xff]
    %v283 = vld [vmem:[#allocation10 + $0x90] sm:$0xff]
    %v284 = vld [vmem:[#allocation10 + $0x98] sm:$0xff]
    %v285 = vld [vmem:[#allocation10 + $0xa0] sm:$0xff]
    %v286 = vld [vmem:[#allocation10 + $0xa8] sm:$0xff]
    %v287 = vld [vmem:[#allocation10 + $0xb0] sm:$0xff]
    %v288 = vld [vmem:[#allocation10 + $0xb8] sm:$0xff]
    %v289 = vld [vmem:[#allocation10 + $0xc0] sm:$0xff]
    %v290 = vld [vmem:[#allocation10 + $0xc8] sm:$0xff]
    %v291 = vld [vmem:[#allocation10 + $0xd0] sm:$0xff]
    %v292 = vld [vmem:[#allocation10 + $0xd8] sm:$0xff]
    %v293 = vld [vmem:[#allocation10 + $0xe0] sm:$0xff]
    %v294 = vld [vmem:[#allocation10 + $0xe8] sm:$0xff]
    %v295 = vld [vmem:[#allocation10 + $0xf0] sm:$0xff]
    %v296 = vld [vmem:[#allocation10 + $0xf8] sm:$0xff]
    %v297 = vld [vmem:[%s6] sm:$0x3]
    %v299 = vlaneseq
    %v300 = vshrl.u32 %v299, 7
    %v301 = vsub.s32 0, %v300
    %v302 = vrot.slane %v297, %v301
    %v303 = vlaneseq
    %v304 = vshrl.u32 %v303, 7
    %v305 = vsub.s32 1, %v304
    %v306 = vrot.slane %v297, %v305
    %309 = vmatprep.subr.mxu0 %v296
    %310 = vmatpush1.msra.mxu0 %v295
    %311 = vmatprep.subr.mxu0 %v294
    %312 = vmatpush1.msra.mxu0 %v293
    %313 = vmatprep.subr.mxu0 %v292
    %314 = vmatpush1.msra.mxu0 %v291
    %315 = vmatprep.subr.mxu0 %v290
    %316 = vmatpush1.msra.mxu0 %v289
    %317 = vmatprep.subr.mxu0 %v288
    %318 = vmatpush1.msra.mxu0 %v287
    %319 = vmatprep.subr.mxu0 %v286
    %320 = vmatpush1.msra.mxu0 %v285
    %321 = vmatprep.subr.mxu0 %v284
    %322 = vmatpush1.msra.mxu0 %v283
    %323 = vmatprep.subr.mxu0 %v282
    %324 = vmatpush1.msra.mxu0 %v281
    %325 = vmatprep.subr.mxu0 %v280
    %326 = vmatpush1.msra.mxu0 %v279
    %327 = vmatprep.subr.mxu0 %v278
    %328 = vmatpush1.msra.mxu0 %v277
    %329 = vmatprep.subr.mxu0 %v276
    %330 = vmatpush1.msra.mxu0 %v275
    %331 = vmatprep.subr.mxu0 %v274
    %332 = vmatpush1.msra.mxu0 %v273
    %333 = vmatprep.subr.mxu0 %v272
    %334 = vmatpush1.msra.mxu0 %v271
    %335 = vmatprep.subr.mxu0 %v270
    %336 = vmatpush1.msra.mxu0 %v269
    %337 = vmatprep.subr.mxu0 %v268
    %338 = vmatpush1.msra.mxu0 %v267
    %339 = vmatprep.subr.mxu0 %v266
    %340 = vmatpush1.msra.mxu0 %v265
    %341 = vmatprep.subr.mxu0 0.0
    %342 = vmatpush2.msra.mxu0 0.0
    %343 = vmatprep.subr.mxu0 0.0
    %344 = vmatpush2.msra.mxu0 0.0
    %345 = vmatprep.subr.mxu0 0.0
    %346 = vmatpush2.msra.mxu0 0.0
    %347 = vmatprep.subr.mxu0 0.0
    %348 = vmatpush2.msra.mxu0 0.0
    %349 = vmatprep.subr.mxu0 0.0
    %350 = vmatpush2.msra.mxu0 0.0
    %351 = vmatprep.subr.mxu0 0.0
    %352 = vmatpush2.msra.mxu0 0.0
    %353 = vmatprep.subr.mxu0 0.0
    %354 = vmatpush2.msra.mxu0 0.0
    %355 = vmatprep.subr.mxu0 0.0
    %356 = vmatpush2.msra.mxu0 0.0
    %357 = vmatprep.subr.mxu0 0.0
    %358 = vmatpush2.msra.mxu0 0.0
    %359 = vmatprep.subr.mxu0 0.0
    %360 = vmatpush2.msra.mxu0 0.0
    %361 = vmatprep.subr.mxu0 0.0
    %362 = vmatpush2.msra.mxu0 0.0
    %363 = vmatprep.subr.mxu0 0.0
    %364 = vmatpush2.msra.mxu0 0.0
    %365 = vmatprep.subr.mxu0 0.0
    %366 = vmatpush2.msra.mxu0 0.0
    %367 = vmatprep.subr.mxu0 0.0
    %368 = vmatpush2.msra.mxu0 0.0
    %369 = vmatprep.subr.mxu0 0.0
    %370 = vmatpush2.msra.mxu0 0.0
    %371 = vmatprep.subr.mxu0 0.0
    %372 = vmatpush2.msra.mxu0 0.0
    %373 = vmatprep.mubr.f32.mxu0 0.0
    %374 = vmatmul.mubr.f32.gmra.mxu0 %v264
    %v375 = vpop.f32.mrf.mxu0
    %v376 = vadd.f32 %v302, %v375
    %v377 = vpop.f32.mrf.mxu0
    %v378 = vadd.f32 %v306, %v377
    %379 = vdwg.mxu0
    %v380 = vld [vmem:[#allocation5] sm:$0xff]
    %v381 = vld [vmem:[#allocation7] sm:$0xff]
    %v382 = vld [vmem:[#allocation7 + $0x8] sm:$0xff]
    %vm383 = vcmask 130048
    %v385 = vsel %vm383, %v380, 0
    %387 = vmatprep.subr.mxu0 0.0
    %388 = vmatpush1.msra.mxu0 0.0
    %389 = vmatprep.subr.mxu0 0.0
    %390 = vmatpush1.msra.mxu0 0.0
    %391 = vmatprep.subr.mxu0 0.0
    %392 = vmatpush1.msra.mxu0 0.0
    %393 = vmatprep.subr.mxu0 0.0
    %394 = vmatpush1.msra.mxu0 0.0
    %395 = vmatprep.subr.mxu0 0.0
    %396 = vmatpush1.msra.mxu0 0.0
    %397 = vmatprep.subr.mxu0 0.0
    %398 = vmatpush1.msra.mxu0 0.0
    %399 = vmatprep.subr.mxu0 0.0
    %400 = vmatpush1.msra.mxu0 0.0
    %401 = vmatprep.subr.mxu0 0.0
    %402 = vmatpush1.msra.mxu0 0.0
    %403 = vmatprep.subr.mxu0 0.0
    %404 = vmatpush1.msra.mxu0 0.0
    %405 = vmatprep.subr.mxu0 0.0
    %406 = vmatpush1.msra.mxu0 0.0
    %407 = vmatprep.subr.mxu0 0.0
    %408 = vmatpush1.msra.mxu0 0.0
    %409 = vmatprep.subr.mxu0 0.0
    %410 = vmatpush1.msra.mxu0 0.0
    %411 = vmatprep.subr.mxu0 0.0
    %412 = vmatpush1.msra.mxu0 0.0
    %413 = vmatprep.subr.mxu0 0.0
    %414 = vmatpush1.msra.mxu0 0.0
    %415 = vmatprep.subr.mxu0 0.0
    %416 = vmatpush1.msra.mxu0 %v382
    %417 = vmatprep.subr.mxu0 0.0
    %418 = vmatpush1.msra.mxu0 %v381
    %419 = vmatprep.subr.mxu0 0.0
    %420 = vmatpush2.msra.mxu0 0.0
    %421 = vmatprep.subr.mxu0 0.0
    %422 = vmatpush2.msra.mxu0 0.0
    %423 = vmatprep.subr.mxu0 0.0
    %424 = vmatpush2.msra.mxu0 0.0
    %425 = vmatprep.subr.mxu0 0.0
    %426 = vmatpush2.msra.mxu0 0.0
    %427 = vmatprep.subr.mxu0 0.0
    %428 = vmatpush2.msra.mxu0 0.0
    %429 = vmatprep.subr.mxu0 0.0
    %430 = vmatpush2.msra.mxu0 0.0
    %431 = vmatprep.subr.mxu0 0.0
    %432 = vmatpush2.msra.mxu0 0.0
    %433 = vmatprep.subr.mxu0 0.0
    %434 = vmatpush2.msra.mxu0 0.0
    %435 = vmatprep.subr.mxu0 0.0
    %436 = vmatpush2.msra.mxu0 0.0
    %437 = vmatprep.subr.mxu0 0.0
    %438 = vmatpush2.msra.mxu0 0.0
    %439 = vmatprep.subr.mxu0 0.0
    %440 = vmatpush2.msra.mxu0 0.0
    %441 = vmatprep.subr.mxu0 0.0
    %442 = vmatpush2.msra.mxu0 0.0
    %443 = vmatprep.subr.mxu0 0.0
    %444 = vmatpush2.msra.mxu0 0.0
    %445 = vmatprep.subr.mxu0 0.0
    %446 = vmatpush2.msra.mxu0 0.0
    %447 = vmatprep.subr.mxu0 0.0
    %448 = vmatpush2.msra.mxu0 0.0
    %449 = vmatprep.subr.mxu0 0.0
    %450 = vmatpush2.msra.mxu0 0.0
    %451 = vmatprep.mubr.f32.mxu0 0.0
    %452 = vmatmul.mubr.f32.gmra.mxu0 %v385
    %v453 = vpop.f32.mrf.mxu0
    %v454 = vadd.f32 0.0, %v453
    %v455 = vpop.f32.mrf.mxu0
    %456 = vdwg.mxu0
    %v457 = vmul.f32 %v378, 0.5
    %v458 = vmul.f32 %v457, 1.442695
    %v459 = vpow.pop %v458
    %v460 = vmul.f32 %v454, %v459
    %v461 = vadd.f32 %v376, %v460
    %v462 = vld [vmem:[#allocation11] sm:$0xff]
    %v463 = vld [vmem:[#allocation11 + $0x8] sm:$0xff]
    %v464 = vld [vmem:[#allocation11 + $0x10] sm:$0xff]
    %v465 = vld [vmem:[#allocation11 + $0x18] sm:$0xff]
    %v466 = vld [vmem:[#allocation11 + $0x20] sm:$0xff]
    %v467 = vld [vmem:[#allocation11 + $0x28] sm:$0xff]
    %v468 = vld [vmem:[#allocation11 + $0x30] sm:$0xff]
    %v469 = vld [vmem:[#allocation11 + $0x38] sm:$0xff]
    %v470 = vld [vmem:[#allocation11 + $0x40] sm:$0xff]
    %v471 = vld [vmem:[#allocation11 + $0x48] sm:$0xff]
    %v472 = vld [vmem:[#allocation11 + $0x50] sm:$0xff]
    %v473 = vld [vmem:[#allocation11 + $0x58] sm:$0xff]
    %v474 = vld [vmem:[#allocation11 + $0x60] sm:$0xff]
    %v475 = vld [vmem:[#allocation11 + $0x68] sm:$0xff]
    %v476 = vld [vmem:[#allocation11 + $0x70] sm:$0xff]
    %v477 = vld [vmem:[#allocation11 + $0x78] sm:$0xff]
    %v478 = vld [vmem:[%s8] sm:$0x1]
    %v480 = vlaneseq
    %v481 = vshrl.u32 %v480, 7
    %v482 = vsub.s32 0, %v481
    %v483 = vrot.slane %v478, %v482
    %485 = vmatprep.subr.mxu0 0.0
    %486 = vmatpush1.msra.mxu0 %v477
    %487 = vmatprep.subr.mxu0 0.0
    %488 = vmatpush1.msra.mxu0 %v476
    %489 = vmatprep.subr.mxu0 0.0
    %490 = vmatpush1.msra.mxu0 %v475
    %491 = vmatprep.subr.mxu0 0.0
    %492 = vmatpush1.msra.mxu0 %v474
    %493 = vmatprep.subr.mxu0 0.0
    %494 = vmatpush1.msra.mxu0 %v473
    %495 = vmatprep.subr.mxu0 0.0
    %496 = vmatpush1.msra.mxu0 %v472
    %497 = vmatprep.subr.mxu0 0.0
    %498 = vmatpush1.msra.mxu0 %v471
    %499 = vmatprep.subr.mxu0 0.0
    %500 = vmatpush1.msra.mxu0 %v470
    %501 = vmatprep.subr.mxu0 0.0
    %502 = vmatpush1.msra.mxu0 %v469
    %503 = vmatprep.subr.mxu0 0.0
    %504 = vmatpush1.msra.mxu0 %v468
    %505 = vmatprep.subr.mxu0 0.0
    %506 = vmatpush1.msra.mxu0 %v467
    %507 = vmatprep.subr.mxu0 0.0
    %508 = vmatpush1.msra.mxu0 %v466
    %509 = vmatprep.subr.mxu0 0.0
    %510 = vmatpush1.msra.mxu0 %v465
    %511 = vmatprep.subr.mxu0 0.0
    %512 = vmatpush1.msra.mxu0 %v464
    %513 = vmatprep.subr.mxu0 0.0
    %514 = vmatpush1.msra.mxu0 %v463
    %515 = vmatprep.subr.mxu0 0.0
    %516 = vmatpush1.msra.mxu0 %v462
    %517 = vmatprep.subr.mxu0 0.0
    %518 = vmatpush2.msra.mxu0 0.0
    %519 = vmatprep.subr.mxu0 0.0
    %520 = vmatpush2.msra.mxu0 0.0
    %521 = vmatprep.subr.mxu0 0.0
    %522 = vmatpush2.msra.mxu0 0.0
    %523 = vmatprep.subr.mxu0 0.0
    %524 = vmatpush2.msra.mxu0 0.0
    %525 = vmatprep.subr.mxu0 0.0
    %526 = vmatpush2.msra.mxu0 0.0
    %527 = vmatprep.subr.mxu0 0.0
    %528 = vmatpush2.msra.mxu0 0.0
    %529 = vmatprep.subr.mxu0 0.0
    %530 = vmatpush2.msra.mxu0 0.0
    %531 = vmatprep.subr.mxu0 0.0
    %532 = vmatpush2.msra.mxu0 0.0
    %533 = vmatprep.subr.mxu0 0.0
    %534 = vmatpush2.msra.mxu0 0.0
    %535 = vmatprep.subr.mxu0 0.0
    %536 = vmatpush2.msra.mxu0 0.0
    %537 = vmatprep.subr.mxu0 0.0
    %538 = vmatpush2.msra.mxu0 0.0
    %539 = vmatprep.subr.mxu0 0.0
    %540 = vmatpush2.msra.mxu0 0.0
    %541 = vmatprep.subr.mxu0 0.0
    %542 = vmatpush2.msra.mxu0 0.0
    %543 = vmatprep.subr.mxu0 0.0
    %544 = vmatpush2.msra.mxu0 0.0
    %545 = vmatprep.subr.mxu0 0.0
    %546 = vmatpush2.msra.mxu0 0.0
    %547 = vmatprep.subr.mxu0 0.0
    %548 = vmatpush2.msra.mxu0 0.0
    %549 = vmatprep.mubr.f32.mxu0 0.0
    %550 = vmatmul.mubr.f32.gmra.mxu0 %v461
    %v551 = vpop.f32.mrf.mxu0
    %v552 = vadd.f32 %v483, %v551
    %v553 = vpop.f32.mrf.mxu0
    %554 = vdwg.mxu0
    %v555 = vmax.f32 %v552, 0.0
    %v556 = vld [vmem:[#allocation13] sm:$0xff]
    %v557 = vld [vmem:[#allocation13 + $0x8] sm:$0xff]
    %v558 = vld [vmem:[#allocation13 + $0x10] sm:$0xff]
    %v559 = vld [vmem:[#allocation13 + $0x18] sm:$0xff]
    %v560 = vld [vmem:[#allocation13 + $0x20] sm:$0xff]
    %v561 = vld [vmem:[#allocation13 + $0x28] sm:$0xff]
    %v562 = vld [vmem:[#allocation13 + $0x30] sm:$0xff]
    %v563 = vld [vmem:[#allocation13 + $0x38] sm:$0xff]
    %v564 = vld [vmem:[#allocation13 + $0x40] sm:$0xff]
    %v565 = vld [vmem:[#allocation13 + $0x48] sm:$0xff]
    %v566 = vld [vmem:[#allocation13 + $0x50] sm:$0xff]
    %v567 = vld [vmem:[#allocation13 + $0x58] sm:$0xff]
    %v568 = vld [vmem:[#allocation13 + $0x60] sm:$0xff]
    %v569 = vld [vmem:[#allocation13 + $0x68] sm:$0xff]
    %v570 = vld [vmem:[#allocation13 + $0x70] sm:$0xff]
    %v571 = vld [vmem:[#allocation13 + $0x78] sm:$0xff]
    %v572 = vld [vmem:[#allocation13 + $0x80] sm:$0xff]
    %v573 = vld [vmem:[#allocation13 + $0x88] sm:$0xff]
    %v574 = vld [vmem:[#allocation13 + $0x90] sm:$0xff]
    %v575 = vld [vmem:[#allocation13 + $0x98] sm:$0xff]
    %v576 = vld [vmem:[#allocation13 + $0xa0] sm:$0xff]
    %v577 = vld [vmem:[#allocation13 + $0xa8] sm:$0xff]
    %v578 = vld [vmem:[#allocation13 + $0xb0] sm:$0xff]
    %v579 = vld [vmem:[#allocation13 + $0xb8] sm:$0xff]
    %v580 = vld [vmem:[#allocation13 + $0xc0] sm:$0xff]
    %v581 = vld [vmem:[#allocation13 + $0xc8] sm:$0xff]
    %v582 = vld [vmem:[#allocation13 + $0xd0] sm:$0xff]
    %v583 = vld [vmem:[#allocation13 + $0xd8] sm:$0xff]
    %v584 = vld [vmem:[#allocation13 + $0xe0] sm:$0xff]
    %v585 = vld [vmem:[#allocation13 + $0xe8] sm:$0xff]
    %v586 = vld [vmem:[#allocation13 + $0xf0] sm:$0xff]
    %v587 = vld [vmem:[#allocation13 + $0xf8] sm:$0xff]
    %v588 = vld [vmem:[%s10] sm:$0x3]
    %v590 = vlaneseq
    %v591 = vshrl.u32 %v590, 7
    %v592 = vsub.s32 0, %v591
    %v593 = vrot.slane %v588, %v592
    %v594 = vlaneseq
    %v595 = vshrl.u32 %v594, 7
    %v596 = vsub.s32 1, %v595
    %v597 = vrot.slane %v588, %v596
    %600 = vmatprep.subr.mxu0 %v587
    %601 = vmatpush1.msra.mxu0 %v586
    %602 = vmatprep.subr.mxu0 %v585
    %603 = vmatpush1.msra.mxu0 %v584
    %604 = vmatprep.subr.mxu0 %v583
    %605 = vmatpush1.msra.mxu0 %v582
    %606 = vmatprep.subr.mxu0 %v581
    %607 = vmatpush1.msra.mxu0 %v580
    %608 = vmatprep.subr.mxu0 %v579
    %609 = vmatpush1.msra.mxu0 %v578
    %610 = vmatprep.subr.mxu0 %v577
    %611 = vmatpush1.msra.mxu0 %v576
    %612 = vmatprep.subr.mxu0 %v575
    %613 = vmatpush1.msra.mxu0 %v574
    %614 = vmatprep.subr.mxu0 %v573
    %615 = vmatpush1.msra.mxu0 %v572
    %616 = vmatprep.subr.mxu0 %v571
    %617 = vmatpush1.msra.mxu0 %v570
    %618 = vmatprep.subr.mxu0 %v569
    %619 = vmatpush1.msra.mxu0 %v568
    %620 = vmatprep.subr.mxu0 %v567
    %621 = vmatpush1.msra.mxu0 %v566
    %622 = vmatprep.subr.mxu0 %v565
    %623 = vmatpush1.msra.mxu0 %v564
    %624 = vmatprep.subr.mxu0 %v563
    %625 = vmatpush1.msra.mxu0 %v562
    %626 = vmatprep.subr.mxu0 %v561
    %627 = vmatpush1.msra.mxu0 %v560
    %628 = vmatprep.subr.mxu0 %v559
    %629 = vmatpush1.msra.mxu0 %v558
    %630 = vmatprep.subr.mxu0 %v557
    %631 = vmatpush1.msra.mxu0 %v556
    %632 = vmatprep.subr.mxu0 0.0
    %633 = vmatpush2.msra.mxu0 0.0
    %634 = vmatprep.subr.mxu0 0.0
    %635 = vmatpush2.msra.mxu0 0.0
    %636 = vmatprep.subr.mxu0 0.0
    %637 = vmatpush2.msra.mxu0 0.0
    %638 = vmatprep.subr.mxu0 0.0
    %639 = vmatpush2.msra.mxu0 0.0
    %640 = vmatprep.subr.mxu0 0.0
    %641 = vmatpush2.msra.mxu0 0.0
    %642 = vmatprep.subr.mxu0 0.0
    %643 = vmatpush2.msra.mxu0 0.0
    %644 = vmatprep.subr.mxu0 0.0
    %645 = vmatpush2.msra.mxu0 0.0
    %646 = vmatprep.subr.mxu0 0.0
    %647 = vmatpush2.msra.mxu0 0.0
    %648 = vmatprep.subr.mxu0 0.0
    %649 = vmatpush2.msra.mxu0 0.0
    %650 = vmatprep.subr.mxu0 0.0
    %651 = vmatpush2.msra.mxu0 0.0
    %652 = vmatprep.subr.mxu0 0.0
    %653 = vmatpush2.msra.mxu0 0.0
    %654 = vmatprep.subr.mxu0 0.0
    %655 = vmatpush2.msra.mxu0 0.0
    %656 = vmatprep.subr.mxu0 0.0
    %657 = vmatpush2.msra.mxu0 0.0
    %658 = vmatprep.subr.mxu0 0.0
    %659 = vmatpush2.msra.mxu0 0.0
    %660 = vmatprep.subr.mxu0 0.0
    %661 = vmatpush2.msra.mxu0 0.0
    %662 = vmatprep.subr.mxu0 0.0
    %663 = vmatpush2.msra.mxu0 0.0
    %664 = vmatprep.mubr.f32.mxu0 0.0
    %665 = vmatmul.mubr.f32.gmra.mxu0 %v555
    %v666 = vpop.f32.mrf.mxu0
    %v667 = vadd.f32 %v593, %v666
    %v668 = vpop.f32.mrf.mxu0
    %v669 = vadd.f32 %v597, %v668
    %670 = vdwg.mxu0
    %v671 = vsub.f32 0.0, %v667
    %v672 = vsub.f32 0.0, %v669
    %v673 = vmul.f32 %v671, 1.442695
    %v674 = vpow.pop %v673
    %v675 = vmul.f32 %v672, 1.442695
    %v676 = vpow.pop %v675
    %v677 = vadd.f32 %v674, 1.0
    %v678 = vadd.f32 %v676, 1.0
    %v679 = vrcp.pop %v677
    %v680 = vrcp.pop %v678
    %v681 = vld [vmem:[#allocation14] sm:$0xff]
    %v682 = vld [vmem:[#allocation14 + $0x8] sm:$0xff]
    %v683 = vld [vmem:[#allocation14 + $0x10] sm:$0xff]
    %v684 = vld [vmem:[#allocation14 + $0x18] sm:$0xff]
    %v685 = vld [vmem:[#allocation14 + $0x20] sm:$0xff]
    %v686 = vld [vmem:[#allocation14 + $0x28] sm:$0xff]
    %v687 = vld [vmem:[#allocation14 + $0x30] sm:$0xff]
    %v688 = vld [vmem:[#allocation14 + $0x38] sm:$0xff]
    %v689 = vld [vmem:[#allocation14 + $0x40] sm:$0xff]
    %v690 = vld [vmem:[#allocation14 + $0x48] sm:$0xff]
    %v691 = vld [vmem:[#allocation14 + $0x50] sm:$0xff]
    %v692 = vld [vmem:[#allocation14 + $0x58] sm:$0xff]
    %v693 = vld [vmem:[#allocation14 + $0x60] sm:$0xff]
    %v694 = vld [vmem:[#allocation14 + $0x68] sm:$0xff]
    %v695 = vld [vmem:[#allocation14 + $0x70] sm:$0xff]
    %v696 = vld [vmem:[#allocation14 + $0x78] sm:$0xff]
    %v697 = vld [vmem:[%s12] sm:$0x1]
    %v699 = vlaneseq
    %v700 = vshrl.u32 %v699, 7
    %v701 = vsub.s32 0, %v700
    %v702 = vrot.slane %v697, %v701
    %704 = vmatprep.subr.mxu0 0.0
    %705 = vmatpush1.msra.mxu0 %v696
    %706 = vmatprep.subr.mxu0 0.0
    %707 = vmatpush1.msra.mxu0 %v695
    %708 = vmatprep.subr.mxu0 0.0
    %709 = vmatpush1.msra.mxu0 %v694
    %710 = vmatprep.subr.mxu0 0.0
    %711 = vmatpush1.msra.mxu0 %v693
    %712 = vmatprep.subr.mxu0 0.0
    %713 = vmatpush1.msra.mxu0 %v692
    %714 = vmatprep.subr.mxu0 0.0
    %715 = vmatpush1.msra.mxu0 %v691
    %716 = vmatprep.subr.mxu0 0.0
    %717 = vmatpush1.msra.mxu0 %v690
    %718 = vmatprep.subr.mxu0 0.0
    %719 = vmatpush1.msra.mxu0 %v689
    %720 = vmatprep.subr.mxu0 0.0
    %721 = vmatpush1.msra.mxu0 %v688
    %722 = vmatprep.subr.mxu0 0.0
    %723 = vmatpush1.msra.mxu0 %v687
    %724 = vmatprep.subr.mxu0 0.0
    %725 = vmatpush1.msra.mxu0 %v686
    %726 = vmatprep.subr.mxu0 0.0
    %727 = vmatpush1.msra.mxu0 %v685
    %728 = vmatprep.subr.mxu0 0.0
    %729 = vmatpush1.msra.mxu0 %v684
    %730 = vmatprep.subr.mxu0 0.0
    %731 = vmatpush1.msra.mxu0 %v683
    %732 = vmatprep.subr.mxu0 0.0
    %733 = vmatpush1.msra.mxu0 %v682
    %734 = vmatprep.subr.mxu0 0.0
    %735 = vmatpush1.msra.mxu0 %v681
    %736 = vmatprep.subr.mxu0 0.0
    %737 = vmatpush2.msra.mxu0 0.0
    %738 = vmatprep.subr.mxu0 0.0
    %739 = vmatpush2.msra.mxu0 0.0
    %740 = vmatprep.subr.mxu0 0.0
    %741 = vmatpush2.msra.mxu0 0.0
    %742 = vmatprep.subr.mxu0 0.0
    %743 = vmatpush2.msra.mxu0 0.0
    %744 = vmatprep.subr.mxu0 0.0
    %745 = vmatpush2.msra.mxu0 0.0
    %746 = vmatprep.subr.mxu0 0.0
    %747 = vmatpush2.msra.mxu0 0.0
    %748 = vmatprep.subr.mxu0 0.0
    %749 = vmatpush2.msra.mxu0 0.0
    %750 = vmatprep.subr.mxu0 0.0
    %751 = vmatpush2.msra.mxu0 0.0
    %752 = vmatprep.subr.mxu0 0.0
    %753 = vmatpush2.msra.mxu0 0.0
    %754 = vmatprep.subr.mxu0 0.0
    %755 = vmatpush2.msra.mxu0 0.0
    %756 = vmatprep.subr.mxu0 0.0
    %757 = vmatpush2.msra.mxu0 0.0
    %758 = vmatprep.subr.mxu0 0.0
    %759 = vmatpush2.msra.mxu0 0.0
    %760 = vmatprep.subr.mxu0 0.0
    %761 = vmatpush2.msra.mxu0 0.0
    %762 = vmatprep.subr.mxu0 0.0
    %763 = vmatpush2.msra.mxu0 0.0
    %764 = vmatprep.subr.mxu0 0.0
    %765 = vmatpush2.msra.mxu0 0.0
    %766 = vmatprep.subr.mxu0 0.0
    %767 = vmatpush2.msra.mxu0 0.0
    %768 = vmatprep.mubr.f32.mxu0 0.0
    %769 = vmatmul.mubr.f32.gmra.mxu0 %v376
    %v770 = vpop.f32.mrf.mxu0
    %v771 = vadd.f32 %v702, %v770
    %v772 = vpop.f32.mrf.mxu0
    %773 = vdwg.mxu0
    %774 = vst [vmem:[#allocation16] sm:$0xff] %v679
    %775 = vst [vmem:[#allocation16 + $0x8] sm:$0xff] %v680
    %776 = vst [vmem:[#allocation17] sm:$0xff] %v376
    %777 = vst [vmem:[#allocation17 + $0x8] sm:$0xff] %v378
    %778 = vst [vmem:[#allocation17 + $0x10] sm:$0xff] %v771
    // Predicated region
    $region86: #{tpu_custom_call.1} parent=1 // pred_check
      _
    $region87: #{tpu_custom_call.1} parent=1 // pred_check_branch
      %780 = sbr.rel (0) target = $region89
    $region88: #{tpu_custom_call.1} parent=1 // pred_region
      %s782 = ssub.s32 256, 256
      %783 = vsyncadd [#allocation4], %s782
      %s785 = sshll.u32 [#allocation16], 4
      %s786 = int_to_ptr.vmem [resolvable:$true] %s785
      %788 = dma.vmem_to_hbm [thread:$0]  %s786, 256, %s13, [#allocation4]
    $region89: #{tpu_custom_call.1} parent=1 // pred_fallthru
      _
    // Predicated region
    $region90: #{tpu_custom_call.1} parent=1 // pred_check
      _
    $region91: #{tpu_custom_call.1} parent=1 // pred_check_branch
      %790 = sbr.rel (0) target = $region93
    $region92: #{tpu_custom_call.1} parent=1 // pred_region
      %s792 = ssub.s32 384, 384
      %793 = vsyncadd [#allocation18], %s792
      %s795 = sshll.u32 [#allocation17], 4
      %s796 = int_to_ptr.vmem [resolvable:$true] %s795
      %798 = dma.vmem_to_hbm [thread:$0]  %s796, 384, %s14, [#allocation18]
    $region93: #{tpu_custom_call.1} parent=1 // pred_fallthru
      _
    // Predicated region
    $region94: #{tpu_custom_call.1} parent=1 // pred_check
      _
    $region95: #{tpu_custom_call.1} parent=1 // pred_check_branch
      %800 = sbr.rel (0) target = $region97
    $region96: #{tpu_custom_call.1} parent=1 // pred_region
      %801 = dma.done [#allocation4], 256
    $region97: #{tpu_custom_call.1} parent=1 // pred_fallthru
      _
    // Predicated region
    $region98: #{tpu_custom_call.1} parent=1 // pred_check
      _
    $region99: #{tpu_custom_call.1} parent=1 // pred_check_branch
      %803 = sbr.rel (0) target = $region101
    $region100: #{tpu_custom_call.1} parent=1 // pred_region
      %804 = dma.done [#allocation18], 384
    $region101: #{tpu_custom_call.1} parent=1 // pred_fallthru
      _
    %805 = vsyncpa [#allocation3], 1
    %806 = vsyncpa [#allocation6], 1
    %807 = vsyncpa [#allocation9], 1
    %808 = vsyncpa [#allocation12], 1
    %809 = vsyncpa [#allocation15], 1
    %810 = vsyncpa [#allocation4], 1
    %811 = vsyncpa [#allocation18], 1

</llo_original>
